<compile_context>
chip_gen: v7x
topology: tpu7x:2x2x1
jax: 0.10.0
libtpu: 0.0.40
codegen_flags: <defaults>
</compile_context>

<pallas_src>
import functools

import jax
import jax.numpy as jnp
from jax.experimental import pallas as pl
from jax.experimental.pallas import tpu as pltpu


def _attend_one_head(Qh, Kh, Vh, *, batch_block, seq_q, seq_kv, head_dim, inv_scale):
    """Scaled dot-product attention for one head over `batch_block` batch elements.

    Qh: (batch_block*seq_q, head_dim) f32; Kh/Vh: (batch_block*seq_kv, head_dim) f32.
    Returns (batch_block*seq_q, head_dim) f32.
    """
    Qh = Qh.reshape(batch_block, seq_q, head_dim).astype(jnp.bfloat16)
    Kh = Kh.reshape(batch_block, seq_kv, head_dim).astype(jnp.bfloat16)
    Vh = Vh.reshape(batch_block, seq_kv, head_dim).astype(jnp.bfloat16)

    # energy = Q K^T / sqrt(head_dim), batched over batch_block; the contraction is
    # over the shared last dim (no explicit K transpose is materialized).
    energy = jnp.einsum("bqd,bkd->bqk", Qh, Kh,
                        preferred_element_type=jnp.float32) * inv_scale
    # TODO(synk): mask (masked_fill -1e10) / train-mode dropout on `energy` not wired in.
    energy = energy - jnp.max(energy, axis=-1, keepdims=True)       # f32 softmax
    p = jnp.exp(energy)
    attn = p * pl.reciprocal(jnp.sum(p, axis=-1, keepdims=True), approx=True)

    ctx = jnp.einsum("bqk,bkd->bqd", attn.astype(jnp.bfloat16), Vh,
                     preferred_element_type=jnp.float32)
    return ctx.reshape(batch_block * seq_q, head_dim)


def _accumulate_output(ctx, wo_ref, bo_ref, o_ref, acc_ref, *, n_heads):
    """acc += ctx_h @ Wo[h]; init with output bias on head 0, store on the last head."""
    h = pl.program_id(1)

    @pl.when(h == 0)
    def _init():
        acc_ref[...] = jnp.broadcast_to(bo_ref[...], acc_ref.shape).astype(jnp.float32)

    acc_ref[...] += jnp.dot(ctx.astype(jnp.bfloat16), wo_ref[...],
                            preferred_element_type=jnp.float32)

    @pl.when(h == n_heads - 1)
    def _store():
        o_ref[...] = acc_ref[...].astype(o_ref.dtype)


def _mha_cross_kernel(q_ref, k_ref, v_ref,
                      wq_ref, bq_ref, wk_ref, bk_ref, wv_ref, bv_ref,
                      wo_ref, bo_ref, o_ref, acc_ref,
                      *, batch_block, seq_q, seq_kv, head_dim, n_heads, inv_scale):
    # Per-head input projections: one head's weight slice per grid step (selected by
    # the BlockSpec index_map, so no in-kernel lane slicing at all).
    Qh = jnp.dot(q_ref[...], wq_ref[...], preferred_element_type=jnp.float32) + bq_ref[...]
    Kh = jnp.dot(k_ref[...], wk_ref[...], preferred_element_type=jnp.float32) + bk_ref[...]
    Vh = jnp.dot(v_ref[...], wv_ref[...], preferred_element_type=jnp.float32) + bv_ref[...]
    ctx = _attend_one_head(Qh, Kh, Vh, batch_block=batch_block, seq_q=seq_q,
                           seq_kv=seq_kv, head_dim=head_dim, inv_scale=inv_scale)
    _accumulate_output(ctx, wo_ref, bo_ref, o_ref, acc_ref, n_heads=n_heads)


def _mha_self_kernel(x_ref, wqkv_ref, bqkv_ref, wo_ref, bo_ref, o_ref, acc_ref,
                     *, batch_block, seq, head_dim, n_heads, inv_scale):
    # Fused per-head QKV projection: one (rows, d_model) x (d_model, 3*head_dim) dot
    # (3x the N dim of the unfused path).  The three result slices are lane-aligned
    # at production head_dim; at tiny head_dim they are masked but bounded (2/step).
    qkv = jnp.dot(x_ref[...], wqkv_ref[...],
                  preferred_element_type=jnp.float32) + bqkv_ref[...]
    Qh = qkv[:, :head_dim]
    Kh = qkv[:, head_dim:2 * head_dim]
    Vh = qkv[:, 2 * head_dim:]
    ctx = _attend_one_head(Qh, Kh, Vh, batch_block=batch_block, seq_q=seq,
                           seq_kv=seq, head_dim=head_dim, inv_scale=inv_scale)
    _accumulate_output(ctx, wo_ref, bo_ref, o_ref, acc_ref, n_heads=n_heads)


def multi_head_attention(query, key, value, params, *, n_heads, batch_block=1):
    """query: [bs, seq_q, d_model]; key/value: [bs, seq_kv, d_model].
    params: dict of (d_model, d_model) weights wq/wk/wv/wo and (1, d_model) biases."""
    bs, seq_q, d_model = query.shape
    _, seq_kv, _ = key.shape
    assert value.shape == key.shape
    assert d_model % n_heads == 0
    head_dim = d_model // n_heads
    inv_scale = 1.0 / (float(head_dim) ** 0.5)

    assert bs % batch_block == 0
    n_blocks = bs // batch_block
    rows_q_blk = batch_block * seq_q
    rows_kv_blk = batch_block * seq_kv
    # bf16 activation blocks want sublane-friendly row counts.
    assert rows_q_blk % 16 == 0 and rows_kv_blk % 16 == 0, \
        "batch_block * seq must be a multiple of 16"
    out_dtype = query.dtype

    # ---- wrapper-side (XLA) layout plumbing, done once ------------------------------
    def act2(x, seq):                      # bf16 at the call boundary (halves DMA bytes)
        return x.reshape(bs * seq, d_model).astype(jnp.bfloat16)

    def split_in_w(w):                     # w_in[h] = W[:, h*hd:(h+1)*hd]
        return jnp.transpose(w.reshape(d_model, n_heads, head_dim), (1, 0, 2)).astype(jnp.bfloat16)

    def split_in_b(b):                     # b_in[h] = b[0, h*hd:(h+1)*hd]
        return b.reshape(n_heads, 1, head_dim).astype(jnp.float32)

    wo3 = params["wo"].reshape(n_heads, head_dim, d_model).astype(jnp.bfloat16)
    bo2 = params["bo"].reshape(1, d_model).astype(jnp.float32)

    # ---- block specs -----------------------------------------------------------------
    grid = (n_blocks, n_heads)
    q_spec = pl.BlockSpec((rows_q_blk, d_model), lambda i, h: (i, 0))
    kv_spec = pl.BlockSpec((rows_kv_blk, d_model), lambda i, h: (i, 0))
    w_in_spec = pl.BlockSpec((None, d_model, head_dim), lambda i, h: (h, 0, 0))
    b_in_spec = pl.BlockSpec((None, 1, head_dim), lambda i, h: (h, 0, 0))
    w_out_spec = pl.BlockSpec((None, head_dim, d_model), lambda i, h: (h, 0, 0))
    bo_spec = pl.BlockSpec((1, d_model), lambda i, h: (0, 0))
    out_spec = pl.BlockSpec((rows_q_blk, d_model), lambda i, h: (i, 0))

    flops = (2 * bs * seq_q * d_model * d_model                 # Q projection
             + 2 * 2 * bs * seq_kv * d_model * d_model          # K, V projections
             + 2 * 2 * bs * n_heads * seq_q * seq_kv * head_dim # QK^T and PV
             + 2 * bs * seq_q * d_model * d_model)              # output projection
    cost = pl.CostEstimate(
        flops=flops,
        transcendentals=bs * n_heads * seq_q * seq_kv,
        bytes_accessed=((bs * seq_q + 2 * bs * seq_kv) * d_model * 2
                        + 4 * d_model * d_model * 2
                        + bs * seq_q * d_model * 4))

    compiler_params = pltpu.CompilerParams(
        dimension_semantics=("parallel", "arbitrary"),
        # Explicit scoped-VMEM budget; pick batch_block so (2x-buffered bf16 activation
        # blocks + per-head weights + f32 scores/accumulator) stay well inside it
        # (v7x has 64 MiB physical VMEM per TensorCore vs 128 MiB on v5e/v6e).
        vmem_limit_bytes=32 * 1024 * 1024)

    scratch = [pltpu.VMEM((rows_q_blk, d_model), jnp.float32)]
    out_shape = jax.ShapeDtypeStruct((bs * seq_q, d_model), out_dtype)

    self_attention = (query is key) and (key is value)
    if self_attention:
        wqkv = jnp.concatenate([split_in_w(params["wq"]),
                                split_in_w(params["wk"]),
                                split_in_w(params["wv"])], axis=-1)   # (H, d, 3*hd)
        bqkv = jnp.concatenate([split_in_b(params["bq"]),
                                split_in_b(params["bk"]),
                                split_in_b(params["bv"])], axis=-1)   # (H, 1, 3*hd)
        kernel = functools.partial(_mha_self_kernel, batch_block=batch_block,
                                   seq=seq_q, head_dim=head_dim, n_heads=n_heads,
                                   inv_scale=inv_scale)
        in_specs = [q_spec,
                    pl.BlockSpec((None, d_model, 3 * head_dim), lambda i, h: (h, 0, 0)),
                    pl.BlockSpec((None, 1, 3 * head_dim), lambda i, h: (h, 0, 0)),
                    w_out_spec, bo_spec]
        args = (act2(query, seq_q), wqkv, bqkv, wo3, bo2)
    else:
        kernel = functools.partial(_mha_cross_kernel, batch_block=batch_block,
                                   seq_q=seq_q, seq_kv=seq_kv, head_dim=head_dim,
                                   n_heads=n_heads, inv_scale=inv_scale)
        in_specs = [q_spec, kv_spec, kv_spec,
                    w_in_spec, b_in_spec, w_in_spec, b_in_spec, w_in_spec, b_in_spec,
                    w_out_spec, bo_spec]
        args = (act2(query, seq_q), act2(key, seq_kv), act2(value, seq_kv),
                split_in_w(params["wq"]), split_in_b(params["bq"]),
                split_in_w(params["wk"]), split_in_b(params["bk"]),
                split_in_w(params["wv"]), split_in_b(params["bv"]),
                wo3, bo2)

    out2 = pl.pallas_call(
        kernel,
        out_shape=out_shape,
        grid_spec=pltpu.PrefetchScalarGridSpec(
            num_scalar_prefetch=0,
            grid=grid,
            in_specs=in_specs,
            out_specs=out_spec,
            scratch_shapes=scratch),
        compiler_params=compiler_params,
        cost_estimate=cost,
    )(*args)

    return out2.reshape(bs, seq_q, d_model)


def _reference(query, key, value, params, *, n_heads):
    bs, seq_q, d_model = query.shape
    hd = d_model // n_heads
    scale = jnp.sqrt(jnp.float32(hd))

    def proj(x, w, b):
        return x @ w + b.reshape(1, 1, d_model)

    def heads(x):
        b, s, _ = x.shape
        return x.reshape(b, s, n_heads, hd).transpose(0, 2, 1, 3)

    Q = heads(proj(query, params["wq"], params["bq"]))
    K = heads(proj(key, params["wk"], params["bk"]))
    V = heads(proj(value, params["wv"], params["bv"]))
    energy = jnp.einsum("bhqd,bhkd->bhqk", Q, K) / scale
    attn = jax.nn.softmax(energy, axis=-1)
    x = jnp.einsum("bhqk,bhkd->bhqd", attn, V)
    x = x.transpose(0, 2, 1, 3).reshape(bs, seq_q, d_model)
    return proj(x, params["wo"], params["bo"])


if __name__ == "__main__":
    bs, seq, d_model, n_heads = 2, 16, 32, 4

    root = jax.random.PRNGKey(0)
    keys = jax.random.split(root, 12)

    def lin_params(kw, kb, d):
        w = jax.random.normal(kw, (d, d), jnp.float32) * 0.05
        b = jax.random.normal(kb, (1, d), jnp.float32) * 0.05
        return w, b

    wq, bq = lin_params(keys[0], keys[1], d_model)
    wk, bk = lin_params(keys[2], keys[3], d_model)
    wv, bv = lin_params(keys[4], keys[5], d_model)
    wo, bo = lin_params(keys[6], keys[7], d_model)
    params = dict(wq=wq, bq=bq, wk=wk, bk=bk, wv=wv, bv=bv, wo=wo, bo=bo)

    # Self-attention (query is key is value) exercises the fused-QKV kernel.
    x = jax.random.normal(keys[8], (bs, seq, d_model), jnp.float32)
    out_self = jax.block_until_ready(multi_head_attention(x, x, x, params, n_heads=n_heads))
    ref_self = _reference(x, x, x, params, n_heads=n_heads)

    # Cross-attention (distinct q/k/v) exercises the general three-dot kernel.
    q = jax.random.normal(keys[9], (bs, seq, d_model), jnp.float32)
    k = jax.random.normal(keys[10], (bs, seq, d_model), jnp.float32)
    v = jax.random.normal(keys[11], (bs, seq, d_model), jnp.float32)
    out_cross = jax.block_until_ready(multi_head_attention(q, k, v, params, n_heads=n_heads))
    ref_cross = _reference(q, k, v, params, n_heads=n_heads)

    for name, got, ref in (("self", out_self, ref_self), ("cross", out_cross, ref_cross)):
        assert got.shape == ref.shape
        max_err = float(jnp.max(jnp.abs(got - ref)))
        # bf16 MXU operands + approx softmax reciprocal -> O(1e-3) error, well below 2e-2.
        assert jnp.allclose(got, ref, atol=2e-2, rtol=2e-2), \
            f"{name}-attention mismatch vs reference (max abs err {max_err})"

    print("KERNEL_OK")
</pallas_src>

<mosaic_0001>
module attributes {stable_mosaic.version = 11 : i64} {
  func.func @_mha_self_kernel(%arg0: i32, %arg1: i32, %arg2: memref<16x32xbf16, #tpu.memory_space<vmem>>, %arg3: memref<1x32x24xbf16, #tpu.memory_space<vmem>>, %arg4: memref<1x1x24xf32, #tpu.memory_space<vmem>>, %arg5: memref<1x8x32xbf16, #tpu.memory_space<vmem>>, %arg6: memref<1x32xf32, #tpu.memory_space<vmem>>, %arg7: memref<16x32xf32, #tpu.memory_space<vmem>>, %arg8: memref<16x32xf32, #tpu.memory_space<vmem>>) attributes {dimension_semantics = [#tpu.dimension_semantics<parallel>, #tpu.dimension_semantics<arbitrary>], iteration_bounds = array<i64: 2, 4>, scalar_prefetch = 0 : i64, scratch_operands = 1 : i64, tpu.core_type = #tpu.core_type<tc>, window_params = [{transform_indices = @transform_0, window_bounds = array<i64: 16, 32>}, {transform_indices = @transform_1, window_bounds = array<i64: 1, 32, 24>}, {transform_indices = @transform_2, window_bounds = array<i64: 1, 1, 24>}, {transform_indices = @transform_3, window_bounds = array<i64: 1, 8, 32>}, {pipeline_mode = #tpu.pipeline_mode<synchronous>, transform_indices = @transform_4, window_bounds = array<i64: 1, 32>}, {transform_indices = @transform_5, window_bounds = array<i64: 16, 32>}]} {
    %c0 = arith.constant 0 : index
    %c0_0 = arith.constant 0 : index
    %0 = vector.load %arg2[%c0, %c0_0] : memref<16x32xbf16, #tpu.memory_space<vmem>>, vector<16x32xbf16>
    %c0_1 = arith.constant 0 : index
    %c0_2 = arith.constant 0 : index
    %c0_3 = arith.constant 0 : index
    %1 = vector.load %arg3[%c0_1, %c0_2, %c0_3] : memref<1x32x24xbf16, #tpu.memory_space<vmem>>, vector<1x32x24xbf16>
    %2 = vector.shape_cast %1 : vector<1x32x24xbf16> to vector<32x24xbf16>
    %cst = arith.constant dense<0.000000e+00> : vector<16x24xf32>
    %3 = tpu.matmul %0, %2, %cst {dimension_numbers = #tpu.dot_dimension_numbers<[1], [0], [0], [1], [0, 0, 1, 1], [], []>} : vector<16x32xbf16>, vector<32x24xbf16>, vector<16x24xf32> -> vector<16x24xf32>
    %c0_4 = arith.constant 0 : index
    %c0_5 = arith.constant 0 : index
    %c0_6 = arith.constant 0 : index
    %4 = vector.load %arg4[%c0_4, %c0_5, %c0_6] : memref<1x1x24xf32, #tpu.memory_space<vmem>>, vector<1x1x24xf32>
    %5 = vector.shape_cast %4 : vector<1x1x24xf32> to vector<1x24xf32>
    %6 = vector.broadcast %5 : vector<1x24xf32> to vector<16x24xf32>
    %7 = arith.addf %3, %6 : vector<16x24xf32>
    %8 = vector.extract_strided_slice %7 {offsets = [0, 0], sizes = [16, 8], strides = [1, 1]} : vector<16x24xf32> to vector<16x8xf32>
    %9 = vector.extract_strided_slice %7 {offsets = [0, 8], sizes = [16, 8], strides = [1, 1]} : vector<16x24xf32> to vector<16x8xf32>
    %10 = vector.extract_strided_slice %7 {offsets = [0, 16], sizes = [16, 8], strides = [1, 1]} : vector<16x24xf32> to vector<16x8xf32>
    %11 = vector.shape_cast %8 : vector<16x8xf32> to vector<1x16x8xf32>
    %12 = arith.truncf %11 : vector<1x16x8xf32> to vector<1x16x8xbf16>
    %13 = vector.shape_cast %9 : vector<16x8xf32> to vector<1x16x8xf32>
    %14 = arith.truncf %13 : vector<1x16x8xf32> to vector<1x16x8xbf16>
    %15 = vector.shape_cast %10 : vector<16x8xf32> to vector<1x16x8xf32>
    %16 = arith.truncf %15 : vector<1x16x8xf32> to vector<1x16x8xbf16>
    "tpu.trace_start"() <{level = 10 : i32, message = "bqd,bkd->bqk"}> : () -> ()
    %cst_7 = arith.constant dense<0.000000e+00> : vector<1x16x16xf32>
    %17 = tpu.matmul %12, %14, %cst_7 {dimension_numbers = #tpu.dot_dimension_numbers<[2], [2], [1], [1], [0, 0, 0, 1, 1, 1], [0], [0]>} : vector<1x16x8xbf16>, vector<1x16x8xbf16>, vector<1x16x16xf32> -> vector<1x16x16xf32>
    "tpu.trace_stop"() : () -> ()
    %cst_8 = arith.constant 0.353553385 : f32
    %18 = vector.broadcast %cst_8 : f32 to vector<1x16x16xf32>
    %19 = arith.mulf %17, %18 : vector<1x16x16xf32>
    %cst_9 = arith.constant dense<0xFF800000> : vector<1x16xf32>
    %20 = vector.multi_reduction <maximumf>, %19, %cst_9 [2] : vector<1x16x16xf32> to vector<1x16xf32>
    %21 = vector.shape_cast %20 : vector<1x16xf32> to vector<1x16x1xf32>
    %22 = vector.broadcast %21 : vector<1x16x1xf32> to vector<1x16x16xf32>
    %23 = arith.subf %19, %22 : vector<1x16x16xf32>
    %24 = math.exp %23 : vector<1x16x16xf32>
    %cst_10 = arith.constant dense<0.000000e+00> : vector<1x16xf32>
    %25 = vector.multi_reduction <add>, %24, %cst_10 [2] : vector<1x16x16xf32> to vector<1x16xf32>
    %26 = vector.shape_cast %25 : vector<1x16xf32> to vector<1x16x1xf32>
    %27 = tpu.reciprocal %26 {approx = true} : vector<1x16x1xf32> -> vector<1x16x1xf32>
    %28 = vector.broadcast %27 : vector<1x16x1xf32> to vector<1x16x16xf32>
    %29 = arith.mulf %24, %28 : vector<1x16x16xf32>
    %30 = arith.truncf %29 : vector<1x16x16xf32> to vector<1x16x16xbf16>
    "tpu.trace_start"() <{level = 10 : i32, message = "bqk,bkd->bqd"}> : () -> ()
    %cst_11 = arith.constant dense<0.000000e+00> : vector<1x16x8xf32>
    %31 = tpu.matmul %30, %16, %cst_11 {dimension_numbers = #tpu.dot_dimension_numbers<[2], [1], [1], [2], [0, 0, 0, 1, 1, 2], [0], [0]>} : vector<1x16x16xbf16>, vector<1x16x8xbf16>, vector<1x16x8xf32> -> vector<1x16x8xf32>
    "tpu.trace_stop"() : () -> ()
    %32 = vector.shape_cast %31 : vector<1x16x8xf32> to vector<16x8xf32>
    %c0_i32 = arith.constant 0 : i32
    %33 = arith.cmpi eq, %arg1, %c0_i32 : i32
    %34 = arith.extui %33 : i1 to i32
    %c0_i32_12 = arith.constant 0 : i32
    %35 = arith.cmpi ne, %34, %c0_i32_12 : i32
    scf.if %35 {
      %c0_22 = arith.constant 0 : index
      %c0_23 = arith.constant 0 : index
      %46 = vector.load %arg6[%c0_22, %c0_23] : memref<1x32xf32, #tpu.memory_space<vmem>>, vector<1x32xf32>
      %47 = vector.shape_cast %46 : vector<1x32xf32> to vector<1x32xf32>
      %48 = vector.broadcast %47 : vector<1x32xf32> to vector<16x32xf32>
      %c0_24 = arith.constant 0 : index
      %c0_25 = arith.constant 0 : index
      %49 = vector.load %arg8[%c0_24, %c0_25] : memref<16x32xf32, #tpu.memory_space<vmem>>, vector<16x32xf32>
      tpu.vector_store %arg8[%c0_24, %c0_25], %48 {strides = array<i32>} : memref<16x32xf32, #tpu.memory_space<vmem>>, vector<16x32xf32>,
    } else {
    }
    %c0_13 = arith.constant 0 : index
    %c0_14 = arith.constant 0 : index
    %36 = vector.load %arg8[%c0_13, %c0_14] : memref<16x32xf32, #tpu.memory_space<vmem>>, vector<16x32xf32>
    %37 = arith.truncf %32 : vector<16x8xf32> to vector<16x8xbf16>
    %c0_15 = arith.constant 0 : index
    %c0_16 = arith.constant 0 : index
    %c0_17 = arith.constant 0 : index
    %38 = vector.load %arg5[%c0_15, %c0_16, %c0_17] : memref<1x8x32xbf16, #tpu.memory_space<vmem>>, vector<1x8x32xbf16>
    %39 = vector.shape_cast %38 : vector<1x8x32xbf16> to vector<8x32xbf16>
    %cst_18 = arith.constant dense<0.000000e+00> : vector<16x32xf32>
    %40 = tpu.matmul %37, %39, %cst_18 {dimension_numbers = #tpu.dot_dimension_numbers<[1], [0], [0], [1], [0, 0, 1, 1], [], []>} : vector<16x8xbf16>, vector<8x32xbf16>, vector<16x32xf32> -> vector<16x32xf32>
    %41 = arith.addf %36, %40 : vector<16x32xf32>
    %c0_19 = arith.constant 0 : index
    %c0_20 = arith.constant 0 : index
    %42 = vector.load %arg8[%c0_19, %c0_20] : memref<16x32xf32, #tpu.memory_space<vmem>>, vector<16x32xf32>
    tpu.vector_store %arg8[%c0_19, %c0_20], %41 {strides = array<i32>} : memref<16x32xf32, #tpu.memory_space<vmem>>, vector<16x32xf32>,
    %c3_i32 = arith.constant 3 : i32
    %43 = arith.cmpi eq, %arg1, %c3_i32 : i32
    %44 = arith.extui %43 : i1 to i32
    %c0_i32_21 = arith.constant 0 : i32
    %45 = arith.cmpi ne, %44, %c0_i32_21 : i32
    scf.if %45 {
      %c0_22 = arith.constant 0 : index
      %c0_23 = arith.constant 0 : index
      %46 = vector.load %arg8[%c0_22, %c0_23] : memref<16x32xf32, #tpu.memory_space<vmem>>, vector<16x32xf32>
      %c0_24 = arith.constant 0 : index
      %c0_25 = arith.constant 0 : index
      %47 = vector.load %arg7[%c0_24, %c0_25] : memref<16x32xf32, #tpu.memory_space<vmem>>, vector<16x32xf32>
      tpu.vector_store %arg7[%c0_24, %c0_25], %46 {strides = array<i32>} : memref<16x32xf32, #tpu.memory_space<vmem>>, vector<16x32xf32>,
    } else {
    }
    return
  }
  func.func @transform_0(%arg0: i32, %arg1: i32) -> (i32, i32) {
    %c0_i32 = arith.constant 0 : i32
    %c0_i32_0 = arith.constant 0 : i32
    return %arg0, %c0_i32 : i32, i32
  }
  func.func @transform_1(%arg0: i32, %arg1: i32) -> (i32, i32, i32) {
    %c0_i32 = arith.constant 0 : i32
    %c0_i32_0 = arith.constant 0 : i32
    %c0_i32_1 = arith.constant 0 : i32
    return %arg1, %c0_i32, %c0_i32_0 : i32, i32, i32
  }
  func.func @transform_2(%arg0: i32, %arg1: i32) -> (i32, i32, i32) {
    %c0_i32 = arith.constant 0 : i32
    %c0_i32_0 = arith.constant 0 : i32
    %c0_i32_1 = arith.constant 0 : i32
    return %arg1, %c0_i32, %c0_i32_0 : i32, i32, i32
  }
  func.func @transform_3(%arg0: i32, %arg1: i32) -> (i32, i32, i32) {
    %c0_i32 = arith.constant 0 : i32
    %c0_i32_0 = arith.constant 0 : i32
    %c0_i32_1 = arith.constant 0 : i32
    return %arg1, %c0_i32, %c0_i32_0 : i32, i32, i32
  }
  func.func @transform_4(%arg0: i32, %arg1: i32) -> (i32, i32) {
    %c0_i32 = arith.constant 0 : i32
    %c0_i32_0 = arith.constant 0 : i32
    %c0_i32_1 = arith.constant 0 : i32
    return %c0_i32, %c0_i32_0 : i32, i32
  }
  func.func @transform_5(%arg0: i32, %arg1: i32) -> (i32, i32) {
    %c0_i32 = arith.constant 0 : i32
    %c0_i32_0 = arith.constant 0 : i32
    return %arg0, %c0_i32 : i32, i32
  }
}

</mosaic_0001>

<llo_original>
// kernel: tpu_custom_call.1
$region0: #{tpu_custom_call.1}
  #allocation0 [shape = 'u32[]', space=smem, size = 0x4, offset = 0x4, fixed_abs, tag = 'smem constant byte address 0x4 - core index']
  #allocation1 [shape = 'u32[144,128]{1,0:T(1,128)}', space=vmem, size = 0x12000, scoped, tag = 'internal scratch']
  #allocation2 [shape = 'f32[16,32]{1,0:T(8,128)}', space=vmem, size = 0x2000, scoped, tag = 'scratch operand']
  %s0 = inlined_call_operand.vmem [shape: bf16[32,32], index: 0, kind: input, shape index: {}]
  %s1 = inlined_call_operand.vmem [shape: bf16[4,32,24], index: 1, kind: input, shape index: {}]
  %s2 = inlined_call_operand.vmem [shape: f32[4,1,24], index: 2, kind: input, shape index: {}]
  %s3 = inlined_call_operand.vmem [shape: bf16[4,8,32], index: 3, kind: input, shape index: {}]
  %s4 = inlined_call_operand.vmem [shape: f32[1,32], index: 4, kind: input, shape index: {}]
  %s5 = inlined_call_operand.hbm [shape: f32[32,32], index: 5, kind: output, shape index: {}]
  %s6 = sld [smem:[#allocation0]]
  $region61: #{tpu_custom_call.1} parent=0
    _
  %s8 = ssub.s32 1, %s6
  %s9 = scalar_select 0, %s8, %s6
  $region1: #{tpu_custom_call.1} parent=0
    #allocation3 [shape = 'u8[16384]{0}', space=vmem, size = 0x4000, scoped, tag = 'output window, operand 0']
    #allocation4 [shape = 's32[2]{0}', space=sflag, size = 0x8, scoped, tag = 'scoped memory for tpu_custom_call.1']
    %10 = vsyncpa [#allocation4], 0
    %s11 = scalar_lea.sflag [#allocation4], 1
    %12 = vsyncpa %s11, 0
    loop: start=0, step=1, limit=10
    $region2: #{tpu_custom_call.1} parent=1 // loop_pre_header
      _
    $region3: #{tpu_custom_call.1} parent=1 // loop_header
      %s14 = sphi 0, %s18
      %p15 = scmp.ge.s32.totalorder %s14, 10
      %s21 = sphi 0, %s33
      %s22 = sphi 0, %s29
      %s23 = sphi 0, %s21
      %s24 = sphi 0, %s22
      %s25 = sphi 0, %s23
      %s26 = sphi 0, %s24
      %s36 = sphi 0, %s38
      %s39 = sphi 0, %s36
      %s40 = sphi 0, %s39
      %s56 = sphi 0, %s40
      %s62 = sphi 0, %s64
      %s65 = sphi 0, %s62
      %s66 = sphi 0, %s65
      %s82 = sphi 0, %s66
      %s88 = sphi 0, %s90
      %s91 = sphi 0, %s88
      %s92 = sphi 0, %s91
      %s108 = sphi 0, %s92
      %s114 = sphi 0, %s116
      %s117 = sphi 0, %s114
      %s118 = sphi 0, %s117
      %s134 = sphi 0, %s118
      %s138 = sphi 0, %s138
      %s140 = sphi 0, %s138
      %s141 = sphi 0, %s140
      %s155 = sphi 0, %s141
      %s161 = sphi 0, %s163
      %s164 = sphi 0, %s161
      %s165 = sphi 0, %s164
      %s181 = sphi 0, %s165
    $region4: #{tpu_custom_call.1} parent=1 // loop_header_branch
      %17 = sbr.rel (%p15) target = $region8
    $region5: #{tpu_custom_call.1} parent=1 // loop_body
      %s19 = ssub.s32 %s14, 1
      %s20 = ssub.s32 %s14, 2
      %s27 = sadd.s32 1, %s22
      %p28 = scmp.ge.s32.totalorder %s27, 4
      %s29 = scalar_select %p28, 0, %s27
      %s30 = sadd.s32 1, %s21
      %s31 = scalar_select %p28, %s30, %s21
      %p32 = scmp.ge.s32.totalorder %s31, 2
      %s33 = scalar_select %p32, 0, %s31
      %s34 = ssub.s32 %s21, %s33
      %p35 = scmp.eq.s32.totalorder %s34, 0
      %s37 = sadd.s32 %s36, 1
      %s38 = scalar_select %p35, %s36, %s37
      %p41 = pneg %p35
      %p42 = scmp.eq.s32.totalorder %s14, 7
      %p43 = por %p41, %p42
      %p44 = scmp.ne.s32.totalorder %s36, %s39
      %p45 = scmp.eq.s32.totalorder %s14, 0
      %p46 = por %p44, %p45
      %p47 = scmp.ne.s32.totalorder %s36, %s39
      %p48 = scmp.eq.s32.totalorder %s19, 7
      %p49 = por %p47, %p48
      %p50 = scmp.ne.s32.totalorder %s39, %s40
      %p51 = scmp.eq.s32.totalorder %s19, 0
      %p52 = por %p50, %p51
      %p53 = scmp.ne.s32.totalorder %s39, %s40
      %p54 = scmp.eq.s32.totalorder %s20, 7
      %p55 = por %p53, %p54
      %p57 = scmp.ne.s32.totalorder %s40, %s56
      %p58 = scmp.eq.s32.totalorder %s20, 0
      %p59 = por %p57, %p58
      %s60 = ssub.s32 %s22, %s29
      %p61 = scmp.eq.s32.totalorder %s60, 0
      %s63 = sadd.s32 %s62, 1
      %s64 = scalar_select %p61, %s62, %s63
      %p67 = pneg %p61
      %p68 = scmp.eq.s32.totalorder %s14, 7
      %p69 = por %p67, %p68
      %p70 = scmp.ne.s32.totalorder %s62, %s65
      %p71 = scmp.eq.s32.totalorder %s14, 0
      %p72 = por %p70, %p71
      %p73 = scmp.ne.s32.totalorder %s62, %s65
      %p74 = scmp.eq.s32.totalorder %s19, 7
      %p75 = por %p73, %p74
      %p76 = scmp.ne.s32.totalorder %s65, %s66
      %p77 = scmp.eq.s32.totalorder %s19, 0
      %p78 = por %p76, %p77
      %p79 = scmp.ne.s32.totalorder %s65, %s66
      %p80 = scmp.eq.s32.totalorder %s20, 7
      %p81 = por %p79, %p80
      %p83 = scmp.ne.s32.totalorder %s66, %s82
      %p84 = scmp.eq.s32.totalorder %s20, 0
      %p85 = por %p83, %p84
      %s86 = ssub.s32 %s22, %s29
      %p87 = scmp.eq.s32.totalorder %s86, 0
      %s89 = sadd.s32 %s88, 1
      %s90 = scalar_select %p87, %s88, %s89
      %p93 = pneg %p87
      %p94 = scmp.eq.s32.totalorder %s14, 7
      %p95 = por %p93, %p94
      %p96 = scmp.ne.s32.totalorder %s88, %s91
      %p97 = scmp.eq.s32.totalorder %s14, 0
      %p98 = por %p96, %p97
      %p99 = scmp.ne.s32.totalorder %s88, %s91
      %p100 = scmp.eq.s32.totalorder %s19, 7
      %p101 = por %p99, %p100
      %p102 = scmp.ne.s32.totalorder %s91, %s92
      %p103 = scmp.eq.s32.totalorder %s19, 0
      %p104 = por %p102, %p103
      %p105 = scmp.ne.s32.totalorder %s91, %s92
      %p106 = scmp.eq.s32.totalorder %s20, 7
      %p107 = por %p105, %p106
      %p109 = scmp.ne.s32.totalorder %s92, %s108
      %p110 = scmp.eq.s32.totalorder %s20, 0
      %p111 = por %p109, %p110
      %s112 = ssub.s32 %s22, %s29
      %p113 = scmp.eq.s32.totalorder %s112, 0
      %s115 = sadd.s32 %s114, 1
      %s116 = scalar_select %p113, %s114, %s115
      %p119 = pneg %p113
      %p120 = scmp.eq.s32.totalorder %s14, 7
      %p121 = por %p119, %p120
      %p122 = scmp.ne.s32.totalorder %s114, %s117
      %p123 = scmp.eq.s32.totalorder %s14, 0
      %p124 = por %p122, %p123
      %p125 = scmp.ne.s32.totalorder %s114, %s117
      %p126 = scmp.eq.s32.totalorder %s19, 7
      %p127 = por %p125, %p126
      %p128 = scmp.ne.s32.totalorder %s117, %s118
      %p129 = scmp.eq.s32.totalorder %s19, 0
      %p130 = por %p128, %p129
      %p131 = scmp.ne.s32.totalorder %s117, %s118
      %p132 = scmp.eq.s32.totalorder %s20, 7
      %p133 = por %p131, %p132
      %p135 = scmp.ne.s32.totalorder %s118, %s134
      %p136 = scmp.eq.s32.totalorder %s20, 0
      %p137 = por %p135, %p136
      %s139 = sadd.s32 %s138, 1
      %p142 = scmp.eq.s32.totalorder %s14, 7
      %p143 = scmp.ne.s32.totalorder %s138, %s140
      %p144 = scmp.eq.s32.totalorder %s14, 0
      %p145 = por %p143, %p144
      %p146 = scmp.ne.s32.totalorder %s138, %s140
      %p147 = scmp.eq.s32.totalorder %s19, 7
      %p148 = por %p146, %p147
      %p149 = scmp.ne.s32.totalorder %s140, %s141
      %p150 = scmp.eq.s32.totalorder %s19, 0
      %p151 = por %p149, %p150
      %p152 = scmp.ne.s32.totalorder %s140, %s141
      %p153 = scmp.eq.s32.totalorder %s20, 7
      %p154 = por %p152, %p153
      %p156 = scmp.ne.s32.totalorder %s141, %s155
      %p157 = scmp.eq.s32.totalorder %s20, 0
      %p158 = por %p156, %p157
      %s159 = ssub.s32 %s21, %s33
      %p160 = scmp.eq.s32.totalorder %s159, 0
      %s162 = sadd.s32 %s161, 1
      %s163 = scalar_select %p160, %s161, %s162
      %p166 = pneg %p160
      %p167 = scmp.eq.s32.totalorder %s14, 7
      %p168 = por %p166, %p167
      %p169 = scmp.ne.s32.totalorder %s161, %s164
      %p170 = scmp.eq.s32.totalorder %s14, 0
      %p171 = por %p169, %p170
      %p172 = scmp.ne.s32.totalorder %s161, %s164
      %p173 = scmp.eq.s32.totalorder %s19, 7
      %p174 = por %p172, %p173
      %p175 = scmp.ne.s32.totalorder %s164, %s165
      %p176 = scmp.eq.s32.totalorder %s19, 0
      %p177 = por %p175, %p176
      %p178 = scmp.ne.s32.totalorder %s164, %s165
      %p179 = scmp.eq.s32.totalorder %s20, 7
      %p180 = por %p178, %p179
      %p182 = scmp.ne.s32.totalorder %s165, %s181
      %p183 = scmp.eq.s32.totalorder %s20, 0
      %p184 = por %p182, %p183
      %p185 = scmp.le.s32.totalorder 1, %s14
      %p186 = scmp.lt.s32.totalorder %s14, 9
      %p187 = pnand %p185, %p186
      %p188 = pneg %p187
      // Predicated region
      $region9: #{tpu_custom_call.1} parent=5 // pred_check
        _
      $region10: #{tpu_custom_call.1} parent=5 // pred_check_branch
        %190 = sbr.rel (%p187) target = $region12
      $region11: #{tpu_custom_call.1} parent=5 // pred_region
        %s191 = ssub.s32 %s14, 1
        // Predicated region
        $region13: #{tpu_custom_call.1} parent=11 // pred_check
          %p192 = pneg %p151
        $region14: #{tpu_custom_call.1} parent=11 // pred_check_branch
          %194 = sbr.rel (%p192) target = $region16
        $region15: #{tpu_custom_call.1} parent=11 // pred_region
          _
        $region16: #{tpu_custom_call.1} parent=11 // pred_fallthru
          _
      $region12: #{tpu_custom_call.1} parent=5 // pred_fallthru
        _
      %p195 = scmp.lt.s32.totalorder %s14, 8
      // Predicated region
      $region17: #{tpu_custom_call.1} parent=5 // pred_check
        %p196 = pneg %p195
      $region18: #{tpu_custom_call.1} parent=5 // pred_check_branch
        %198 = sbr.rel (%p196) target = $region20
      $region19: #{tpu_custom_call.1} parent=5 // pred_region
        // Predicated region
        $region21: #{tpu_custom_call.1} parent=19 // pred_check
          %p199 = pneg %p46
        $region22: #{tpu_custom_call.1} parent=19 // pred_check_branch
          %201 = sbr.rel (%p199) target = $region24
        $region23: #{tpu_custom_call.1} parent=19 // pred_region
          %s202 = smul.u32 2, %s21
          %p203 = scmp.lt.s32.totalorder %s202, 3
          %s204 = scalar_select %p203, %s202, 3
          %s205 = smul.addr %s204, 4
          %s206 = scalar_lea.vmem %s0, %s205
          %s207 = smul.u32 2, %s21
        $region24: #{tpu_custom_call.1} parent=19 // pred_fallthru
          _
        // Predicated region
        $region25: #{tpu_custom_call.1} parent=19 // pred_check
          %p208 = pneg %p72
        $region26: #{tpu_custom_call.1} parent=19 // pred_check_branch
          %210 = sbr.rel (%p208) target = $region28
        $region27: #{tpu_custom_call.1} parent=19 // pred_region
          %p211 = scmp.lt.s32.totalorder %s22, 3
          %s212 = scalar_select %p211, %s22, 3
          %s213 = smul.addr %s212, 4
          %s214 = smul.addr %s213, 4
          %s215 = scalar_lea.vmem %s1, %s214
        $region28: #{tpu_custom_call.1} parent=19 // pred_fallthru
          _
        // Predicated region
        $region29: #{tpu_custom_call.1} parent=19 // pred_check
          %p216 = pneg %p98
        $region30: #{tpu_custom_call.1} parent=19 // pred_check_branch
          %218 = sbr.rel (%p216) target = $region32
        $region31: #{tpu_custom_call.1} parent=19 // pred_region
          %p219 = scmp.lt.s32.totalorder %s22, 3
          %s220 = scalar_select %p219, %s22, 3
          %s221 = scalar_lea.vmem %s2, %s220
        $region32: #{tpu_custom_call.1} parent=19 // pred_fallthru
          _
        // Predicated region
        $region33: #{tpu_custom_call.1} parent=19 // pred_check
          %p222 = pneg %p124
        $region34: #{tpu_custom_call.1} parent=19 // pred_check_branch
          %224 = sbr.rel (%p222) target = $region36
        $region35: #{tpu_custom_call.1} parent=19 // pred_region
          %p225 = scmp.lt.s32.totalorder %s22, 3
          %s226 = scalar_select %p225, %s22, 3
          %s227 = smul.addr %s226, 4
          %s228 = scalar_lea.vmem %s3, %s227
        $region36: #{tpu_custom_call.1} parent=19 // pred_fallthru
          _
      $region20: #{tpu_custom_call.1} parent=5 // pred_fallthru
        _
      %p229 = scmp.le.s32.totalorder 1, %s14
      %p230 = scmp.lt.s32.totalorder %s14, 9
      %p231 = pnand %p229, %p230
      %p232 = pneg %p231
      // Predicated region
      $region37: #{tpu_custom_call.1} parent=5 // pred_check
        _
      $region38: #{tpu_custom_call.1} parent=5 // pred_check_branch
        %234 = sbr.rel (%p231) target = $region40
      $region39: #{tpu_custom_call.1} parent=5 // pred_region
        %s235 = ssub.s32 %s14, 1
        %s236 = smul.u32 2, %s23
        %p237 = scmp.lt.s32.totalorder %s236, 3
        %s238 = scalar_select %p237, %s236, 3
        %s239 = smul.addr %s238, 4
        %s240 = scalar_lea.vmem %s0, %s239
        %p241 = pneg %p52
        %p242 = pneg %p49
        %p243 = scmp.lt.s32.totalorder %s24, 3
        %s244 = scalar_select %p243, %s24, 3
        %s245 = smul.addr %s244, 4
        %s246 = smul.addr %s245, 4
        %s247 = scalar_lea.vmem %s1, %s246
        %p248 = pneg %p78
        %p249 = pneg %p75
        %p250 = scmp.lt.s32.totalorder %s24, 3
        %s251 = scalar_select %p250, %s24, 3
        %s252 = scalar_lea.vmem %s2, %s251
        %p253 = pneg %p104
        %p254 = pneg %p101
        %p255 = scmp.lt.s32.totalorder %s24, 3
        %s256 = scalar_select %p255, %s24, 3
        %s257 = smul.addr %s256, 4
        %s258 = scalar_lea.vmem %s3, %s257
        %p259 = pneg %p130
        %p260 = pneg %p127
        %p261 = pneg %p151
        %p262 = pneg %p148
        %p263 = pneg %p177
        %p264 = pneg %p174
        %s265 = sand.u32 %s164, 1
        %s266 = scalar_lea.sflag [#allocation4], %s265
        %s267 = sand.u32 %s164, 1
        %s268 = smul.addr %s267, 16
        %s269 = scalar_lea.vmem [#allocation3], %s268
        %s270 = smul.u32 2, %s23
        %p271 = scmp.lt.s32.totalorder %s270, 3
        %s272 = scalar_select %p271, %s270, 3
        %s273 = smul.addr %s272, 4
        %s274 = scalar_lea.vmem %s0, %s273
        %s275 = smul.u32 2, %s23
        %p276 = scmp.lt.s32.totalorder %s24, 3
        %s277 = scalar_select %p276, %s24, 3
        %s278 = smul.addr %s277, 4
        %s279 = smul.addr %s278, 4
        %s280 = scalar_lea.vmem %s1, %s279
        %p281 = scmp.lt.s32.totalorder %s24, 3
        %s282 = scalar_select %p281, %s24, 3
        %s283 = scalar_lea.vmem %s2, %s282
        %p284 = scmp.lt.s32.totalorder %s24, 3
        %s285 = scalar_select %p284, %s24, 3
        %s286 = smul.addr %s285, 4
        %s287 = scalar_lea.vmem %s3, %s286
        %s288 = smul.u32 2, %s23
        %v290 = vld [vmem:[%s274] sm:$0xf]
        %v291 = vld [vmem:[%s274 + $0x4] sm:$0xf]
        %v292 = vld [vmem:[%s280] sm:$0xf]
        %v293 = vld [vmem:[%s280 + $0x4] sm:$0xf]
        %v294 = vld [vmem:[%s280 + $0x8] sm:$0xf]
        %v295 = vld [vmem:[%s280 + $0xc] sm:$0xf]
        %v296 = vld [vmem:[%s283] sm:$0x1]
        %v298 = vlaneseq
        %v299 = vshrl.u32 %v298, 7
        %v300 = vsub.s32 0, %v299
        %v301 = vrot.slane %v296, %v300
        %v305 = vunpack.c.l.b16 %v290
        %v306 = vunpack.c.l.b16 %v291
        %v307 = vpack.c.b16 %v306, %v305
        %v312 = vunpack.c.l.b16 %v292
        %v313 = vunpack.c.l.b16 %v293
        %v314 = vunpack.c.l.b16 %v294
        %v315 = vunpack.c.l.b16 %v295
        %v316 = vpack.c.b16 %v313, %v312
        %v317 = vpack.c.b16 %v315, %v314
        %vm320 = vcmask 261120
        %v322 = vsel %vm320, %v307, 0
        %324 = vmatprep.subr.bf16.mxu0 0
        %325 = vmatpush1.bf16.msra.mxu0 %v316
        %326 = vmatprep.subr.bf16.mxu0 0
        %327 = vmatpush1.bf16.msra.mxu0 %v317
        %328 = vmatprep.subr.bf16.mxu0 0
        %329 = vmatpush1.bf16.msra.mxu0 0
        %330 = vmatprep.subr.bf16.mxu0 0
        %331 = vmatpush1.bf16.msra.mxu0 0
        %332 = vmatprep.subr.bf16.mxu0 0
        %333 = vmatpush1.bf16.msra.mxu0 0
        %334 = vmatprep.subr.bf16.mxu0 0
        %335 = vmatpush1.bf16.msra.mxu0 0
        %336 = vmatprep.subr.bf16.mxu0 0
        %337 = vmatpush1.bf16.msra.mxu0 0
        %338 = vmatprep.subr.bf16.mxu0 0
        %339 = vmatpush1.bf16.msra.mxu0 0
        %340 = vmatprep.subr.bf16.mxu0 0
        %341 = vmatpush1.bf16.msra.mxu0 0
        %342 = vmatprep.subr.bf16.mxu0 0
        %343 = vmatpush1.bf16.msra.mxu0 0
        %344 = vmatprep.subr.bf16.mxu0 0
        %345 = vmatpush1.bf16.msra.mxu0 0
        %346 = vmatprep.subr.bf16.mxu0 0
        %347 = vmatpush1.bf16.msra.mxu0 0
        %348 = vmatprep.subr.bf16.mxu0 0
        %349 = vmatpush1.bf16.msra.mxu0 0
        %350 = vmatprep.subr.bf16.mxu0 0
        %351 = vmatpush1.bf16.msra.mxu0 0
        %352 = vmatprep.subr.bf16.mxu0 0
        %353 = vmatpush1.bf16.msra.mxu0 0
        %354 = vmatprep.subr.bf16.mxu0 0
        %355 = vmatpush1.bf16.msra.mxu0 0
        %356 = vmatprep.mubr.bf16.mxu0 0
        %357 = vmatmul.mubr.bf16.gmra.mrb[0].mxu0 %v322
        %v358 = vpop.f32.mrb[0].mxu0
        %v359 = vadd.f32 %v301, %v358
        %v360 = vpop.f32.mrb[0].mxu0
        %v361 = vpop.f32.mrb[0].mxu0
        %v362 = vadd.f32 %v301, %v361
        %v363 = vpop.f32.mrb[0].mxu0
        %364 = vdwg.mxu0
        %v365 = vpack.c.bf16 %v362, %v359
        %367 = vrot.lane.b32.xlu0 %v365, 120
        %v368 = vpop.permute.xlu0 %367
        %vm369 = vcmask 64512
        %v371 = vsel %vm369, %v365, 0
        %v374 = vsel %vm369, %v368, 0
        %376 = vmatprep.subr.bf16.mxu0 0
        %377 = vmatpush1.bf16.xpose.msra.mxu0 %v374
        %378 = vmatprep.subr.bf16.mxu0 0
        %379 = vmatpush1.bf16.xpose.msra.mxu0 0
        %380 = vmatprep.subr.bf16.mxu0 0
        %381 = vmatpush1.bf16.xpose.msra.mxu0 0
        %382 = vmatprep.subr.bf16.mxu0 0
        %383 = vmatpush1.bf16.xpose.msra.mxu0 0
        %384 = vmatprep.subr.bf16.mxu0 0
        %385 = vmatpush1.bf16.xpose.msra.mxu0 0
        %386 = vmatprep.subr.bf16.mxu0 0
        %387 = vmatpush1.bf16.xpose.msra.mxu0 0
        %388 = vmatprep.subr.bf16.mxu0 0
        %389 = vmatpush1.bf16.xpose.msra.mxu0 0
        %390 = vmatprep.subr.bf16.mxu0 0
        %391 = vmatpush1.bf16.xpose.msra.mxu0 0
        %392 = vmatprep.subr.bf16.mxu0 0
        %393 = vmatpush1.bf16.xpose.msra.mxu0 0
        %394 = vmatprep.subr.bf16.mxu0 0
        %395 = vmatpush1.bf16.xpose.msra.mxu0 0
        %396 = vmatprep.subr.bf16.mxu0 0
        %397 = vmatpush1.bf16.xpose.msra.mxu0 0
        %398 = vmatprep.subr.bf16.mxu0 0
        %399 = vmatpush1.bf16.xpose.msra.mxu0 0
        %400 = vmatprep.subr.bf16.mxu0 0
        %401 = vmatpush1.bf16.xpose.msra.mxu0 0
        %402 = vmatprep.subr.bf16.mxu0 0
        %403 = vmatpush1.bf16.xpose.msra.mxu0 0
        %404 = vmatprep.subr.bf16.mxu0 0
        %405 = vmatpush1.bf16.xpose.msra.mxu0 0
        %406 = vmatprep.subr.bf16.mxu0 0
        %407 = vmatpush1.bf16.xpose.msra.mxu0 0
        %408 = vmatprep.mubr.bf16.mxu0 0
        %409 = vmatmul.mubr.bf16.gmra.mrb[0].mxu0 %v371
        %v410 = vpop.f32.mrb[0].mxu0
        %v411 = vadd.f32 0.0, %v410
        %v412 = vpop.f32.mrb[0].mxu0
        %v413 = vpop.f32.mrb[0].mxu0
        %v414 = vadd.f32 0.0, %v413
        %v415 = vpop.f32.mrb[0].mxu0
        %416 = vdwg.mxu0
        %v417 = vmul.f32 %v411, 0.35355338
        %v418 = vmul.f32 %v414, 0.35355338
        %vm419 = vcmask 130048
        %v420 = vsel %vm419, %v417, -inf
        %421 = vmax.xlane.f32.xlu0 %v420
        %v422 = vpop.xlane.xlu0 %421
        %v423 = vsel %vm419, %v418, -inf
        %424 = vmax.xlane.f32.xlu0 %v423
        %v425 = vpop.xlane.xlu0 %424
        %v426 = vsub.f32 %v417, %v422
        %v427 = vsub.f32 %v418, %v425
        %v428 = vmul.f32 %v426, 1.442695
        %v429 = vpow.pop %v428
        %v430 = vmul.f32 %v427, 1.442695
        %v431 = vpow.pop %v430
        %v432 = vsel %vm419, %v429, 0.0
        %433 = vadd.xlane.f32.xlu0 %v432
        %v434 = vpop.xlane.xlu0 %433
        %v435 = vsel %vm419, %v431, 0.0
        %436 = vadd.xlane.f32.xlu0 %v435
        %v437 = vpop.xlane.xlu0 %436
        %v438 = vrcp.pop %v434
        %v439 = vrcp.pop %v437
        %v440 = vmul.f32 %v429, %v438
        %v441 = vmul.f32 %v431, %v439
        %v442 = vpack.c.bf16 %v441, %v440
        %443 = vrot.lane.b32.xlu0 %v365, 112
        %v444 = vpop.permute.xlu0 %443
        %v447 = vsel %vm419, %v442, 0
        %449 = vmatprep.subr.bf16.mxu0 0
        %450 = vmatpush1.bf16.msra.mxu0 %v444
        %451 = vmatprep.subr.bf16.mxu0 0
        %452 = vmatpush1.bf16.msra.mxu0 0
        %453 = vmatprep.subr.bf16.mxu0 0
        %454 = vmatpush1.bf16.msra.mxu0 0
        %455 = vmatprep.subr.bf16.mxu0 0
        %456 = vmatpush1.bf16.msra.mxu0 0
        %457 = vmatprep.subr.bf16.mxu0 0
        %458 = vmatpush1.bf16.msra.mxu0 0
        %459 = vmatprep.subr.bf16.mxu0 0
        %460 = vmatpush1.bf16.msra.mxu0 0
        %461 = vmatprep.subr.bf16.mxu0 0
        %462 = vmatpush1.bf16.msra.mxu0 0
        %463 = vmatprep.subr.bf16.mxu0 0
        %464 = vmatpush1.bf16.msra.mxu0 0
        %465 = vmatprep.subr.bf16.mxu0 0
        %466 = vmatpush1.bf16.msra.mxu0 0
        %467 = vmatprep.subr.bf16.mxu0 0
        %468 = vmatpush1.bf16.msra.mxu0 0
        %469 = vmatprep.subr.bf16.mxu0 0
        %470 = vmatpush1.bf16.msra.mxu0 0
        %471 = vmatprep.subr.bf16.mxu0 0
        %472 = vmatpush1.bf16.msra.mxu0 0
        %473 = vmatprep.subr.bf16.mxu0 0
        %474 = vmatpush1.bf16.msra.mxu0 0
        %475 = vmatprep.subr.bf16.mxu0 0
        %476 = vmatpush1.bf16.msra.mxu0 0
        %477 = vmatprep.subr.bf16.mxu0 0
        %478 = vmatpush1.bf16.msra.mxu0 0
        %479 = vmatprep.subr.bf16.mxu0 0
        %480 = vmatpush1.bf16.msra.mxu0 0
        %481 = vmatprep.mubr.bf16.mxu0 0
        %482 = vmatmul.mubr.bf16.gmra.mrb[0].mxu0 %v447
        %v483 = vpop.f32.mrb[0].mxu0
        %v484 = vadd.f32 0.0, %v483
        %v485 = vpop.f32.mrb[0].mxu0
        %v486 = vpop.f32.mrb[0].mxu0
        %v487 = vadd.f32 0.0, %v486
        %v488 = vpop.f32.mrb[0].mxu0
        %489 = vdwg.mxu0
        %p490 = scmp.eq.s32.totalorder %s24, 0
        // Predicated region
        $region41: #{tpu_custom_call.1} parent=39 // pred_check
          %p491 = pneg %p490
        $region42: #{tpu_custom_call.1} parent=39 // pred_check_branch
          %493 = sbr.rel (%p491) target = $region44
        $region43: #{tpu_custom_call.1} parent=39 // pred_region
          %v494 = vld [vmem:[%s4] sm:$0x1]
          %v496 = vlaneseq
          %v497 = vshrl.u32 %v496, 7
          %v498 = vsub.s32 0, %v497
          %v499 = vrot.slane %v494, %v498
          %501 = vst.msk [vmem:[#allocation2] sm:$0xff] %vm320, %v499
          %502 = vst.msk [vmem:[#allocation2 + $0x8] sm:$0xff] %vm320, %v499
        $region44: #{tpu_custom_call.1} parent=39 // pred_fallthru
          _
        %v503 = vld [vmem:[#allocation2] sm:$0xff]
        %v504 = vld [vmem:[#allocation2 + $0x8] sm:$0xff]
        %v505 = vpack.c.bf16 %v487, %v484
        %v506 = vld [vmem:[%s287] sm:$0xf]
        %v508 = vsel %vm369, %v505, 0
        %vm510 = vcmask 1043456
        %v512 = vsel %vm510, %v506, 0
        %514 = vmatprep.subr.bf16.mxu0 0
        %515 = vmatpush1.bf16.msra.mxu0 %v512
        %516 = vmatprep.subr.bf16.mxu0 0
        %517 = vmatpush1.bf16.msra.mxu0 0
        %518 = vmatprep.subr.bf16.mxu0 0
        %519 = vmatpush1.bf16.msra.mxu0 0
        %520 = vmatprep.subr.bf16.mxu0 0
        %521 = vmatpush1.bf16.msra.mxu0 0
        %522 = vmatprep.subr.bf16.mxu0 0
        %523 = vmatpush1.bf16.msra.mxu0 0
        %524 = vmatprep.subr.bf16.mxu0 0
        %525 = vmatpush1.bf16.msra.mxu0 0
        %526 = vmatprep.subr.bf16.mxu0 0
        %527 = vmatpush1.bf16.msra.mxu0 0
        %528 = vmatprep.subr.bf16.mxu0 0
        %529 = vmatpush1.bf16.msra.mxu0 0
        %530 = vmatprep.subr.bf16.mxu0 0
        %531 = vmatpush1.bf16.msra.mxu0 0
        %532 = vmatprep.subr.bf16.mxu0 0
        %533 = vmatpush1.bf16.msra.mxu0 0
        %534 = vmatprep.subr.bf16.mxu0 0
        %535 = vmatpush1.bf16.msra.mxu0 0
        %536 = vmatprep.subr.bf16.mxu0 0
        %537 = vmatpush1.bf16.msra.mxu0 0
        %538 = vmatprep.subr.bf16.mxu0 0
        %539 = vmatpush1.bf16.msra.mxu0 0
        %540 = vmatprep.subr.bf16.mxu0 0
        %541 = vmatpush1.bf16.msra.mxu0 0
        %542 = vmatprep.subr.bf16.mxu0 0
        %543 = vmatpush1.bf16.msra.mxu0 0
        %544 = vmatprep.subr.bf16.mxu0 0
        %545 = vmatpush1.bf16.msra.mxu0 0
        %546 = vmatprep.mubr.bf16.mxu0 0
        %547 = vmatmul.mubr.bf16.gmra.mrb[0].mxu0 %v508
        %v548 = vpop.f32.mrb[0].mxu0
        %v549 = vadd.f32 0.0, %v548
        %v550 = vpop.f32.mrb[0].mxu0
        %v551 = vpop.f32.mrb[0].mxu0
        %v552 = vadd.f32 0.0, %v551
        %v553 = vpop.f32.mrb[0].mxu0
        %554 = vdwg.mxu0
        %v555 = vadd.f32 %v503, %v549
        %v556 = vadd.f32 %v504, %v552
        %557 = vst.msk [vmem:[#allocation2] sm:$0xff] %vm320, %v555
        %558 = vst.msk [vmem:[#allocation2 + $0x8] sm:$0xff] %vm320, %v556
        %p559 = scmp.eq.s32.totalorder %s24, 3
        // Predicated region
        $region45: #{tpu_custom_call.1} parent=39 // pred_check
          %p560 = pneg %p559
        $region46: #{tpu_custom_call.1} parent=39 // pred_check_branch
          %562 = sbr.rel (%p560) target = $region48
        $region47: #{tpu_custom_call.1} parent=39 // pred_region
          %v563 = vld [vmem:[#allocation2] sm:$0xff]
          %v564 = vld [vmem:[#allocation2 + $0x8] sm:$0xff]
          %565 = vst.msk [vmem:[%s269] sm:$0xff] %vm320, %v563
          %566 = vst.msk [vmem:[%s269 + $0x8] sm:$0xff] %vm320, %v564
        $region48: #{tpu_custom_call.1} parent=39 // pred_fallthru
          _
        %s567 = sand.u32 %s164, 1
        %s568 = scalar_lea.sflag [#allocation4], %s567
        %s569 = sand.u32 %s164, 1
        %s570 = smul.addr %s569, 16
        %s571 = scalar_lea.vmem [#allocation3], %s570
        // Predicated region
        $region49: #{tpu_custom_call.1} parent=39 // pred_check
          %p572 = pneg %p174
        $region50: #{tpu_custom_call.1} parent=39 // pred_check_branch
          %574 = sbr.rel (%p572) target = $region52
        $region51: #{tpu_custom_call.1} parent=39 // pred_region
          %s575 = smul.u32 2, %s23
          %s577 = ssub.s32 256, 256
          %578 = vsyncadd %s568, %s577
          %s579 = smul.addr %s575, 128
          %s580 = scalar_lea.hbm %s5, %s579
          %s581 = sshll.u32 %s571, 4
          %s582 = int_to_ptr.vmem [resolvable:$true] %s581
          %587 = dma.vmem_to_hbm [thread:$0]  %s582, 256, %s580, %s568, 128, 128, 8
        $region52: #{tpu_custom_call.1} parent=39 // pred_fallthru
          _
      $region40: #{tpu_custom_call.1} parent=5 // pred_fallthru
        _
      %p588 = scmp.le.s32.totalorder 2, %s14
      // Predicated region
      $region53: #{tpu_custom_call.1} parent=5 // pred_check
        %p589 = pneg %p588
      $region54: #{tpu_custom_call.1} parent=5 // pred_check_branch
        %591 = sbr.rel (%p589) target = $region56
      $region55: #{tpu_custom_call.1} parent=5 // pred_region
        %s592 = ssub.s32 %s14, 2
        // Predicated region
        $region57: #{tpu_custom_call.1} parent=55 // pred_check
          %p593 = pneg %p180
        $region58: #{tpu_custom_call.1} parent=55 // pred_check_branch
          %595 = sbr.rel (%p593) target = $region60
        $region59: #{tpu_custom_call.1} parent=55 // pred_region
          %s596 = sand.u32 %s165, 1
          %s597 = scalar_lea.sflag [#allocation4], %s596
          %s598 = sand.u32 %s165, 1
          %s599 = smul.addr %s598, 16
          %s600 = scalar_lea.vmem [#allocation3], %s599
          %601 = dma.done %s597, 256
        $region60: #{tpu_custom_call.1} parent=55 // pred_fallthru
          _
      $region56: #{tpu_custom_call.1} parent=5 // pred_fallthru
        _
    $region6: #{tpu_custom_call.1} parent=1 // loop_footer
      %s18 = sadd.s32 1, %s14
    $region7: #{tpu_custom_call.1} parent=1 // loop_footer_branch
      %13 = sbr.rel target = $region3
    $region8: #{tpu_custom_call.1} parent=1 // loop_exit
      _
    %602 = vsyncpa [#allocation4], 1
    %s603 = scalar_lea.sflag [#allocation4], 1
    %604 = vsyncpa %s603, 1

</llo_original>
